<compile_context>
chip_gen: v7x
topology: tpu7x:2x2x1
jax: 0.10.0
libtpu: 0.0.40
codegen_flags: <defaults>
</compile_context>

<pallas_src>
import functools
import math

import jax
import jax.numpy as jnp
from jax.experimental import pallas as pl
from jax.experimental.pallas import tpu as pltpu

LANE = 128


# ------------------------------- kernels ----------------------------------- #

def _gaussian_noise_prng_kernel(seed_ref, x_ref, o_ref, *, sigma, noise_dtype):
    """TPU path: sample N(0,1) in-kernel with the hardware PRNG."""
    # Multi-word seed mixes (user seed, tile id) so every grid tile draws an
    # independent stream and consecutive user seeds do not alias across tiles.
    pltpu.prng_seed(seed_ref[0], pl.program_id(0))
    noise = pltpu.stateful_normal(x_ref.shape, noise_dtype)
    # out = x * (1 + sigma * N(0,1)); the factor is cast once so the final
    # multiply runs in the caller's dtype (packed bf16 VALU on v6e/v7x).
    factor = (1.0 + sigma * noise).astype(o_ref.dtype)
    o_ref[...] = x_ref[...] * factor


def _apply_noise_kernel(x_ref, noise_ref, o_ref, *, sigma):
    """Fallback path: N(0,1) precomputed outside; fuse scale + add."""
    factor = (1.0 + sigma * noise_ref[...].astype(jnp.float32)).astype(o_ref.dtype)
    o_ref[...] = x_ref[...] * factor


# ---------------------------- device heuristics ----------------------------- #

def _device_kind():
    try:
        return jax.devices()[0].device_kind.lower()
    except Exception:  # pragma: no cover
        return ""


def _gen_params(kind):
    """Per-generation block size / VMEM-limit / noise-precision policy."""
    if ("v7" in kind) or ("7x" in kind):
        # v7x: ~3.2 TB/s HBM, 64 MiB VMEM -> bigger blocks; explicit limit so
        # the double-buffered in+out footprint (4 * block = 32 MiB) fits.
        return dict(target_block_bytes=8 * 1024 * 1024,
                    vmem_limit_bytes=48 * 1024 * 1024,
                    allow_low_precision_noise=True)
    if ("v3" in kind) or ("v4" in kind) or ("v5" in kind):
        # v5e: 16 MiB scoped-VMEM default; 2 MiB blocks double-buffered = 8 MiB.
        # No bf16 VPU/EUP -> keep all math in f32.
        return dict(target_block_bytes=2 * 1024 * 1024,
                    vmem_limit_bytes=None,
                    allow_low_precision_noise=False)
    # v6e / unknown: 32 MiB scoped default; 4 MiB blocks -> 16 MiB footprint.
    return dict(target_block_bytes=4 * 1024 * 1024,
                vmem_limit_bytes=None,
                allow_low_precision_noise=True)


@functools.lru_cache(maxsize=None)
def _stateful_normal_supported(dtype_name):
    """One-off probe: does pltpu.stateful_normal lower for this dtype here?"""
    dtype = jnp.dtype(dtype_name)

    def _probe(o_ref):
        pltpu.prng_seed(12345)
        o_ref[...] = pltpu.stateful_normal(o_ref.shape, dtype)

    try:
        out = pl.pallas_call(
            _probe, out_shape=jax.ShapeDtypeStruct((8, LANE), dtype))()
        jax.block_until_ready(out)
        return True
    except Exception:
        return False


# -------------------------------- layout ------------------------------------ #

def _sublane_pack(itemsize):
    # 4-byte -> 8 rows, 2-byte -> 16, 1-byte -> 32 (packed sublane layout).
    return max(8, 32 // max(int(itemsize), 1))


def _choose_layout(n, itemsize, target_block_bytes):
    """Pick a lane-dense (rows, width) slab and the block row count."""
    width = None
    for w in (4096, 2048, 1024, 512, 256, 128):
        if n % w == 0:
            width = w
            break
    needs_pad = width is None        # only when numel is not a multiple of 128
    if needs_pad:
        width = LANE
    rows = pl.cdiv(n, width)

    pack = _sublane_pack(itemsize)
    max_rows = max(pack, target_block_bytes // (width * itemsize))
    if rows <= max_rows:
        tile_rows = rows             # single block; block dims == array dims
    else:
        tile_rows = (max_rows // pack) * pack   # dtype-aware sublane rounding
    return width, rows, tile_rows, needs_pad


# -------------------------------- wrapper ----------------------------------- #

def gaussian_noise(x, seed, sigma=0.1, is_relative_detach=True,
                   donate_input=False, target_block_bytes=None):
    """Pallas forward pass of GaussianNoise: out = x * (1 + sigma * N(0, 1)).

    `is_relative_detach` only changes gradient flow (stop_gradient on the noise
    scale); forward values are identical, so it does not affect this kernel.
    Pass a fresh `seed` every training step -- with a constant seed the same
    noise is redrawn each call.
    """
    # TODO(synk): forward-only -- no custom_vjp, so jax.grad through this op
    # (and the is_relative_detach gradient semantics) is not implemented.
    del is_relative_detach

    orig_shape = x.shape
    orig_dtype = x.dtype
    n = math.prod(orig_shape) if orig_shape else 1
    if n == 0:
        return x

    on_tpu = jax.default_backend() == "tpu"
    params = _gen_params(_device_kind() if on_tpu else "")
    if target_block_bytes is None:
        target_block_bytes = params["target_block_bytes"]

    itemsize = jnp.dtype(orig_dtype).itemsize
    width, rows, tile_rows, needs_pad = _choose_layout(
        n, itemsize, target_block_bytes)

    if needs_pad:
        flat = jnp.pad(x.reshape(-1), (0, rows * width - n))
        x2d = flat.reshape(rows, width)
    else:
        x2d = x.reshape(rows, width)

    grid = (pl.cdiv(rows, tile_rows),)
    block = (tile_rows, width)

    cp_kwargs = dict(dimension_semantics=("parallel",))
    if params["vmem_limit_bytes"] is not None:
        cp_kwargs["vmem_limit_bytes"] = params["vmem_limit_bytes"]
    compiler_params = pltpu.CompilerParams(**cp_kwargs)

    # Noise precision: bf16 on chips with bf16 VPU/EUP when x is bf16 (cheaper
    # transcendental / store traffic for the sampler), otherwise f32.
    use_prng = False
    noise_dtype = jnp.float32
    if on_tpu:
        candidates = []
        if (params["allow_low_precision_noise"]
                and jnp.dtype(orig_dtype) == jnp.dtype(jnp.bfloat16)):
            candidates.append(jnp.bfloat16)
        candidates.append(jnp.float32)
        for cand in candidates:
            if _stateful_normal_supported(jnp.dtype(cand).name):
                noise_dtype = cand
                use_prng = True
                break

    if use_prng:
        seed_arr = jnp.asarray([seed], dtype=jnp.int32)
        out2d = pl.pallas_call(
            functools.partial(_gaussian_noise_prng_kernel, sigma=float(sigma),
                              noise_dtype=noise_dtype),
            out_shape=jax.ShapeDtypeStruct((rows, width), orig_dtype),
            grid_spec=pltpu.PrefetchScalarGridSpec(
                num_scalar_prefetch=1,
                grid=grid,
                in_specs=[pl.BlockSpec(block, lambda i, *_: (i, 0))],
                out_specs=pl.BlockSpec(block, lambda i, *_: (i, 0)),
            ),
            compiler_params=compiler_params,
            # Input index 1 is x2d (index 0 is the prefetched seed).
            input_output_aliases=({1: 0} if donate_input else {}),
        )(seed_arr, x2d)
    else:
        # Non-TPU backends / interpret mode (or if the stateful sampler does
        # not lower): sample N(0,1) with jax.random outside and fuse scale+add
        # inside a Pallas kernel.  Different stream than the TPU HW PRNG path.
        noise2d = jax.random.normal(jax.random.PRNGKey(seed), (rows, width),
                                    dtype=jnp.float32)
        out2d = pl.pallas_call(
            functools.partial(_apply_noise_kernel, sigma=float(sigma)),
            out_shape=jax.ShapeDtypeStruct((rows, width), orig_dtype),
            grid=grid,
            in_specs=[pl.BlockSpec(block, lambda i: (i, 0)),
                      pl.BlockSpec(block, lambda i: (i, 0))],
            out_specs=pl.BlockSpec(block, lambda i: (i, 0)),
            compiler_params=compiler_params,
            input_output_aliases=({0: 0} if donate_input else {}),
        )(x2d, noise2d)

    if needs_pad:
        return out2d.reshape(-1)[:n].reshape(orig_shape)
    return out2d.reshape(orig_shape)


# --------------------------------- demo ------------------------------------- #

if __name__ == "__main__":
    sigma = 0.1

    # Small NCHW-like activation, consistent with where this regularizer sits.
    x = jax.random.normal(jax.random.PRNGKey(0), (2, 4, 16, 16),
                          dtype=jnp.float32)
    y = jax.block_until_ready(
        gaussian_noise(x, seed=1234, sigma=sigma, is_relative_detach=True))
    assert y.shape == x.shape and y.dtype == x.dtype
    assert bool(jnp.all(jnp.isfinite(y)))
    rel = jnp.abs(y - x) / (jnp.abs(x) + 1e-8)
    assert float(jnp.mean(rel)) < 1.0            # noise is relative & bounded
    assert float(jnp.max(jnp.abs(y - x))) > 0.0  # noise actually applied

    # bf16 path: kernel I/O (and, on v6e/v7x, the sampler) stays bf16.
    xb = jax.random.normal(jax.random.PRNGKey(1), (4, 8, 128),
                           dtype=jnp.bfloat16)
    yb = jax.block_until_ready(gaussian_noise(xb, seed=7, sigma=sigma))
    assert yb.shape == xb.shape and yb.dtype == xb.dtype
    assert bool(jnp.all(jnp.isfinite(yb.astype(jnp.float32))))

    # Multi-tile grid with a partial boundary block (no pad/slice round-trip):
    # rows = 51, tile_rows = 16 -> grid 4, last block covers only 3 rows.
    xr = jax.random.normal(jax.random.PRNGKey(2), (3, 136, 128),
                           dtype=jnp.float32)
    yr = jax.block_until_ready(
        gaussian_noise(xr, seed=99, sigma=sigma, target_block_bytes=64 * 1024))
    assert yr.shape == xr.shape and yr.dtype == xr.dtype
    assert bool(jnp.all(jnp.isfinite(yr)))
    relr = jnp.abs(yr - xr) / (jnp.abs(xr) + 1e-8)
    assert float(jnp.mean(relr)) < 1.0
    assert float(jnp.max(jnp.abs(yr - xr))) > 0.0

    print("KERNEL_OK")
</pallas_src>

<mosaic_0001>
module attributes {stable_mosaic.version = 11 : i64} {
  func.func @_apply_noise_kernel(%arg0: i32, %arg1: memref<1x2048xf32, #tpu.memory_space<vmem>>, %arg2: memref<1x2048xf32, #tpu.memory_space<vmem>>, %arg3: memref<1x2048xf32, #tpu.memory_space<vmem>>) attributes {dimension_semantics = [#tpu.dimension_semantics<parallel>], iteration_bounds = array<i64: 1>, scalar_prefetch = 0 : i64, scratch_operands = 0 : i64, tpu.core_type = #tpu.core_type<tc>, window_params = [{transform_indices = @transform_0, window_bounds = array<i64: 1, 2048>}, {transform_indices = @transform_1, window_bounds = array<i64: 1, 2048>}, {transform_indices = @transform_2, window_bounds = array<i64: 1, 2048>}]} {
    %c0 = arith.constant 0 : index
    %c0_0 = arith.constant 0 : index
    %0 = vector.load %arg2[%c0, %c0_0] : memref<1x2048xf32, #tpu.memory_space<vmem>>, vector<1x2048xf32>
    %cst = arith.constant 1.000000e-01 : f32
    %1 = vector.broadcast %cst : f32 to vector<1x2048xf32>
    %2 = arith.mulf %1, %0 : vector<1x2048xf32>
    %cst_1 = arith.constant 1.000000e+00 : f32
    %3 = vector.broadcast %cst_1 : f32 to vector<1x2048xf32>
    %4 = arith.addf %3, %2 : vector<1x2048xf32>
    %c0_2 = arith.constant 0 : index
    %c0_3 = arith.constant 0 : index
    %5 = vector.load %arg1[%c0_2, %c0_3] : memref<1x2048xf32, #tpu.memory_space<vmem>>, vector<1x2048xf32>
    %6 = arith.mulf %5, %4 : vector<1x2048xf32>
    %c0_4 = arith.constant 0 : index
    %c0_5 = arith.constant 0 : index
    %7 = vector.load %arg3[%c0_4, %c0_5] : memref<1x2048xf32, #tpu.memory_space<vmem>>, vector<1x2048xf32>
    tpu.vector_store %arg3[%c0_4, %c0_5], %6 {strides = array<i32>} : memref<1x2048xf32, #tpu.memory_space<vmem>>, vector<1x2048xf32>,
    return
  }
  func.func @transform_0(%arg0: i32) -> (i32, i32) {
    %c0_i32 = arith.constant 0 : i32
    %c0_i32_0 = arith.constant 0 : i32
    return %arg0, %c0_i32 : i32, i32
  }
  func.func @transform_1(%arg0: i32) -> (i32, i32) {
    %c0_i32 = arith.constant 0 : i32
    %c0_i32_0 = arith.constant 0 : i32
    return %arg0, %c0_i32 : i32, i32
  }
  func.func @transform_2(%arg0: i32) -> (i32, i32) {
    %c0_i32 = arith.constant 0 : i32
    %c0_i32_0 = arith.constant 0 : i32
    return %arg0, %c0_i32 : i32, i32
  }
}

</mosaic_0001>

<llo_original>
// kernel: tpu_custom_call.1
$region0: #{tpu_custom_call.1}
  #allocation0 [shape = 'u32[]', space=smem, size = 0x4, offset = 0x4, fixed_abs, tag = 'smem constant byte address 0x4 - core index']
  #allocation1 [shape = 'u32[144,128]{1,0:T(1,128)}', space=vmem, size = 0x12000, scoped, tag = 'internal scratch']
  %s0 = inlined_call_operand.hbm [shape: f32[1,2048], index: 0, kind: input, shape index: {}]
  %s1 = inlined_call_operand.hbm [shape: f32[1,2048], index: 1, kind: input, shape index: {}]
  %s2 = inlined_call_operand.hbm [shape: f32[1,2048], index: 2, kind: output, shape index: {}]
  %s3 = sld [smem:[#allocation0]]
  $region26: #{tpu_custom_call.1} parent=0
    _
  %s5 = ssub.s32 1, %s3
  %s6 = scalar_select 0, %s5, %s3
  $region1: #{tpu_custom_call.1} parent=0
    #allocation2 [shape = 'u8[8192]{0}', space=vmem, size = 0x2000, scoped, tag = 'input window, operand 0, single buffered']
    #allocation3 [shape = 's32[1]{0}', space=sflag, size = 0x4, scoped, tag = 'scoped memory for tpu_custom_call.1']
    #allocation4 [shape = 's32[1]{0}', space=sflag, size = 0x4, scoped, tag = 'scoped memory for tpu_custom_call.1']
    #allocation5 [shape = 'u8[8192]{0}', space=vmem, size = 0x2000, scoped, tag = 'input window, operand 1, single buffered']
    #allocation6 [shape = 's32[1]{0}', space=sflag, size = 0x4, scoped, tag = 'scoped memory for tpu_custom_call.1']
    #allocation7 [shape = 'u8[8192]{0}', space=vmem, size = 0x2000, scoped, tag = 'output window, operand 0, single buffered']
    %7 = vsyncpa [#allocation3], 0
    %8 = vsyncpa [#allocation6], 0
    %9 = vsyncpa [#allocation4], 0
    // Predicated region
    $region2: #{tpu_custom_call.1} parent=1 // pred_check
      _
    $region3: #{tpu_custom_call.1} parent=1 // pred_check_branch
      %11 = sbr.rel (0) target = $region5
    $region4: #{tpu_custom_call.1} parent=1 // pred_region
      %s13 = ssub.s32 256, 256
      %14 = vsyncadd [#allocation3], %s13
      %s16 = sshll.u32 [#allocation2], 4
      %s17 = int_to_ptr.vmem [resolvable:$true] %s16
      %19 = dma.hbm_to_vmem [thread:$0]  %s0, 256, %s17, [#allocation3]
    $region5: #{tpu_custom_call.1} parent=1 // pred_fallthru
      _
    // Predicated region
    $region6: #{tpu_custom_call.1} parent=1 // pred_check
      _
    $region7: #{tpu_custom_call.1} parent=1 // pred_check_branch
      %21 = sbr.rel (0) target = $region9
    $region8: #{tpu_custom_call.1} parent=1 // pred_region
      %s23 = ssub.s32 256, 256
      %24 = vsyncadd [#allocation6], %s23
      %s26 = sshll.u32 [#allocation5], 4
      %s27 = int_to_ptr.vmem [resolvable:$true] %s26
      %29 = dma.hbm_to_vmem [thread:$0]  %s1, 256, %s27, [#allocation6]
    $region9: #{tpu_custom_call.1} parent=1 // pred_fallthru
      _
    // Predicated region
    $region10: #{tpu_custom_call.1} parent=1 // pred_check
      _
    $region11: #{tpu_custom_call.1} parent=1 // pred_check_branch
      %31 = sbr.rel (0) target = $region13
    $region12: #{tpu_custom_call.1} parent=1 // pred_region
      %32 = dma.done [#allocation3], 256
    $region13: #{tpu_custom_call.1} parent=1 // pred_fallthru
      _
    // Predicated region
    $region14: #{tpu_custom_call.1} parent=1 // pred_check
      _
    $region15: #{tpu_custom_call.1} parent=1 // pred_check_branch
      %34 = sbr.rel (0) target = $region17
    $region16: #{tpu_custom_call.1} parent=1 // pred_region
      %35 = dma.done [#allocation6], 256
    $region17: #{tpu_custom_call.1} parent=1 // pred_fallthru
      _
    %v36 = vld [vmem:[#allocation5] sm:$0xff]
    %v37 = vld [vmem:[#allocation5 + $0x8] sm:$0xff]
    %v38 = vmul.f32 %v36, 0.1
    %v39 = vmul.f32 %v37, 0.1
    %v40 = vadd.f32 %v38, 1.0
    %v41 = vadd.f32 %v39, 1.0
    %v42 = vld [vmem:[#allocation2] sm:$0xff]
    %v43 = vld [vmem:[#allocation2 + $0x8] sm:$0xff]
    %v44 = vmul.f32 %v42, %v40
    %v45 = vmul.f32 %v43, %v41
    %46 = vst [vmem:[#allocation7] sm:$0xff] %v44
    %47 = vst [vmem:[#allocation7 + $0x8] sm:$0xff] %v45
    // Predicated region
    $region18: #{tpu_custom_call.1} parent=1 // pred_check
      _
    $region19: #{tpu_custom_call.1} parent=1 // pred_check_branch
      %49 = sbr.rel (0) target = $region21
    $region20: #{tpu_custom_call.1} parent=1 // pred_region
      %s51 = ssub.s32 256, 256
      %52 = vsyncadd [#allocation4], %s51
      %s54 = sshll.u32 [#allocation7], 4
      %s55 = int_to_ptr.vmem [resolvable:$true] %s54
      %57 = dma.vmem_to_hbm [thread:$0]  %s55, 256, %s2, [#allocation4]
    $region21: #{tpu_custom_call.1} parent=1 // pred_fallthru
      _
    // Predicated region
    $region22: #{tpu_custom_call.1} parent=1 // pred_check
      _
    $region23: #{tpu_custom_call.1} parent=1 // pred_check_branch
      %59 = sbr.rel (0) target = $region25
    $region24: #{tpu_custom_call.1} parent=1 // pred_region
      %60 = dma.done [#allocation4], 256
    $region25: #{tpu_custom_call.1} parent=1 // pred_fallthru
      _
    %61 = vsyncpa [#allocation3], 1
    %62 = vsyncpa [#allocation6], 1
    %63 = vsyncpa [#allocation4], 1

</llo_original>
